<compile_context>
chip_gen: v7x
topology: tpu7x:2x2x1
jax: 0.10.0
libtpu: 0.0.40
codegen_flags: <defaults>
</compile_context>

<pallas_src>
import jax
import jax.numpy as jnp
from jax.experimental import pallas as pl
from jax.experimental.pallas import tpu as pltpu


def _round_up(a: int, b: int) -> int:
    return (a + b - 1) // b * b


def router_kernel(x_ref, w1_ref, b1_ref, w2_ref, b2_ref,
                  rw_ref, tw_ref, ti_ref):
    """One [TILE_N, D] row-tile of the router -> three direct outputs."""
    x = x_ref[...]                                               # [TN, D] bf16

    # dynamics_extractor: Linear -> ReLU -> Linear (f32 accumulation on MXU)
    h = jnp.dot(x, w1_ref[...], preferred_element_type=jnp.float32) + b1_ref[...]
    h = jnp.maximum(h, 0.0)                                      # ReLU
    logits = (jnp.dot(h.astype(w2_ref.dtype), w2_ref[...],
                      preferred_element_type=jnp.float32) + b2_ref[...])

    # softmax over experts (exact divide; kernel is HBM-bound, cost is noise)
    m = jnp.max(logits, axis=-1, keepdims=True)
    e = jnp.exp(logits - m)                                      # [TN, E] f32
    s = jnp.sum(e, axis=-1, keepdims=True)
    rw_ref[...] = (e / s).astype(rw_ref.dtype)                   # single store

    tn, n_experts = e.shape
    idx = jax.lax.broadcasted_iota(jnp.int32, (tn, n_experts), 1)

    # top-1 / top-2 on the exponentials (same ordering as softmax weights;
    # first occurrence on ties, matching torch.topk / lax.top_k)
    e1 = jnp.max(e, axis=-1, keepdims=True)
    i1 = jnp.min(jnp.where(e == e1, idx, n_experts), axis=-1, keepdims=True)
    masked = jnp.where(idx == i1, -jnp.inf, e)
    e2 = jnp.max(masked, axis=-1, keepdims=True)
    i2 = jnp.min(jnp.where(masked == e2, idx, n_experts), axis=-1, keepdims=True)

    # renormalized top-2 weights straight from the exponentials:
    #   rw_top / (rw1 + rw2) == e_top / (e1 + e2)  (softmax denom cancels)
    denom = e1 + e2
    tw1 = e1 / denom
    tw2 = e2 / denom

    # Assemble the 2-lane outputs in registers -> one store each.
    col = jax.lax.broadcasted_iota(jnp.int32, (tn, 2), 1)
    tw_ref[...] = jnp.where(col == 0, tw1, tw2).astype(tw_ref.dtype)
    ti_ref[...] = jnp.where(col == 0, i1, i2)


def inference_dynamics_router(x2d, w1, b1, w2, b2, *,
                              tile_n: int = 8192,
                              compute_dtype=jnp.bfloat16):
    """x2d: [N, D]; weights stored as [in, out]; biases as [1, out].

    Returns (routing_weights [N, E] f32, top2_weights [N, 2] f32,
             top2_indices [N, 2] i32).
    """
    N, D = x2d.shape
    H = w1.shape[1]
    E = w2.shape[1]
    # TODO(synk): the E == 1 degenerate top_k = min(2, E) path is not implemented.
    assert E >= 2, "kernel implements top-2 routing; need num_experts >= 2"

    # bf16 activations/weights halve HBM read traffic; matmuls accumulate f32.
    xc = x2d.astype(compute_dtype)
    w1c = w1.astype(compute_dtype)
    w2c = w2.astype(compute_dtype)
    b1c = b1.astype(jnp.float32)
    b2c = b2.astype(jnp.float32)

    # Row tiling: big tiles amortize the ~0.35 us/step overhead, but cap so
    # the grid has >=2 steps when N is large enough (lets "parallel" shard
    # rows across both TensorCores on v7x; neutral on v5e/v6e).
    tile_n = min(tile_n, _round_up(N, 8))                 # don't exceed the data
    if N > 1024:
        tile_n = min(tile_n, max(512, _round_up(pl.cdiv(N, 2), 8)))
    grid = (pl.cdiv(N, tile_n),)                          # ragged last tile OK

    itemsize = jnp.dtype(compute_dtype).itemsize
    out_row_bytes = E * 4 + 2 * 4 + 2 * 4                 # rw f32 + tw f32 + ti i32
    cost = pl.CostEstimate(
        flops=2 * N * (D * H + H * E),
        transcendentals=N * E,
        bytes_accessed=(N * D * itemsize                  # x
                        + D * H * itemsize + H * 4        # w1, b1
                        + H * E * itemsize + E * 4        # w2, b2
                        + N * out_row_bytes),             # three outputs
    )

    # Honest VMEM request: double-buffered x + outputs + resident params,
    # 2x headroom, floor of 8 MiB (well under every generation's budget).
    vmem_used = (2 * tile_n * D * itemsize
                 + 2 * tile_n * out_row_bytes
                 + 2 * (D * H * itemsize + H * 4 + H * E * itemsize + E * 4))
    vmem_limit = max(8 << 20, _round_up(2 * vmem_used + (1 << 20), 1 << 20))

    rw, tw, ti = pl.pallas_call(
        router_kernel,
        out_shape=(
            jax.ShapeDtypeStruct((N, E), jnp.float32),
            jax.ShapeDtypeStruct((N, 2), jnp.float32),
            jax.ShapeDtypeStruct((N, 2), jnp.int32),
        ),
        grid=grid,
        in_specs=[
            pl.BlockSpec((tile_n, D), lambda i: (i, 0)),  # x streamed per tile
            pl.BlockSpec((D, H), lambda i: (0, 0)),       # params stay resident
            pl.BlockSpec((1, H), lambda i: (0, 0)),
            pl.BlockSpec((H, E), lambda i: (0, 0)),
            pl.BlockSpec((1, E), lambda i: (0, 0)),
        ],
        out_specs=[
            pl.BlockSpec((tile_n, E), lambda i: (i, 0)),
            pl.BlockSpec((tile_n, 2), lambda i: (i, 0)),
            pl.BlockSpec((tile_n, 2), lambda i: (i, 0)),
        ],
        compiler_params=pltpu.CompilerParams(
            dimension_semantics=("parallel",),            # shard rows over TCs (v7x)
            vmem_limit_bytes=int(vmem_limit),
        ),
        cost_estimate=cost,
    )(xc, w1c, b1c, w2c, b2c)

    return rw, tw, ti


def reference(x2d, w1, b1, w2, b2, compute_dtype=jnp.bfloat16):
    """Pure-JAX reference using the same bf16 compute dtype as the kernel."""
    xc = x2d.astype(compute_dtype)
    w1c = w1.astype(compute_dtype)
    w2c = w2.astype(compute_dtype)
    h = jnp.maximum(jnp.dot(xc, w1c, preferred_element_type=jnp.float32) + b1, 0.0)
    logits = jnp.dot(h.astype(compute_dtype), w2c,
                     preferred_element_type=jnp.float32) + b2
    rw = jax.nn.softmax(logits, axis=-1)
    tw, ti = jax.lax.top_k(rw, 2)
    tw = tw / jnp.sum(tw, axis=-1, keepdims=True)
    return rw, tw, ti.astype(jnp.int32)


if __name__ == "__main__":
    batch, seq = 2, 8
    input_dim, num_experts = 32, 8
    hidden = input_dim // 2

    key = jax.random.PRNGKey(0)
    kx, k1, k2, k3, k4 = jax.random.split(key, 5)

    # deterministic synthetic parameters (Linear weights stored as [in, out])
    bound1 = 1.0 / jnp.sqrt(input_dim)
    bound2 = 1.0 / jnp.sqrt(hidden)
    w1 = jax.random.uniform(k1, (input_dim, hidden), jnp.float32, -bound1, bound1)
    b1 = jax.random.uniform(k2, (1, hidden), jnp.float32, -bound1, bound1)
    w2 = jax.random.uniform(k3, (hidden, num_experts), jnp.float32, -bound2, bound2)
    b2 = jax.random.uniform(k4, (1, num_experts), jnp.float32, -bound2, bound2)

    x = jax.random.normal(kx, (batch, seq, input_dim), jnp.float32)
    x2d = x.reshape(batch * seq, input_dim)

    rw, tw, ti = inference_dynamics_router(x2d, w1, b1, w2, b2)
    jax.block_until_ready((rw, tw, ti))

    # reshape back to the module's leading dims and build routing_info
    routing_weights = rw.reshape(batch, seq, num_experts)
    top_weights = tw.reshape(batch, seq, 2)
    top_indices = ti.reshape(batch, seq, 2)
    routing_info = {
        "routing_weights": routing_weights,
        "selected_experts": top_indices,
        "expert_weights": top_weights,
        "inference_dynamics": "analyzed",
    }

    # correctness check against a pure-JAX reference (same bf16 compute dtype)
    rw_r, tw_r, ti_r = reference(x2d, w1, b1, w2, b2)
    assert jnp.allclose(rw, rw_r, atol=1e-3, rtol=1e-3), "routing_weights mismatch"
    assert jnp.allclose(tw, tw_r, atol=1e-3, rtol=1e-3), "top-2 weights mismatch"
    assert jnp.array_equal(ti, ti_r), "top-2 indices mismatch"

    print("KERNEL_OK")
</pallas_src>

<mosaic_0001>
module attributes {stable_mosaic.version = 11 : i64} {
  func.func @router_kernel(%arg0: i32, %arg1: memref<16x32xbf16, #tpu.memory_space<vmem>>, %arg2: memref<32x16xbf16, #tpu.memory_space<vmem>>, %arg3: memref<1x16xf32, #tpu.memory_space<vmem>>, %arg4: memref<16x8xbf16, #tpu.memory_space<vmem>>, %arg5: memref<1x8xf32, #tpu.memory_space<vmem>>, %arg6: memref<16x8xf32, #tpu.memory_space<vmem>>, %arg7: memref<16x2xf32, #tpu.memory_space<vmem>>, %arg8: memref<16x2xi32, #tpu.memory_space<vmem>>) attributes {dimension_semantics = [#tpu.dimension_semantics<parallel>], iteration_bounds = array<i64: 1>, scalar_prefetch = 0 : i64, scratch_operands = 0 : i64, tpu.core_type = #tpu.core_type<tc>, window_params = [{transform_indices = @transform_0, window_bounds = array<i64: 16, 32>}, {pipeline_mode = #tpu.pipeline_mode<synchronous>, transform_indices = @transform_1, window_bounds = array<i64: 32, 16>}, {pipeline_mode = #tpu.pipeline_mode<synchronous>, transform_indices = @transform_2, window_bounds = array<i64: 1, 16>}, {pipeline_mode = #tpu.pipeline_mode<synchronous>, transform_indices = @transform_3, window_bounds = array<i64: 16, 8>}, {pipeline_mode = #tpu.pipeline_mode<synchronous>, transform_indices = @transform_4, window_bounds = array<i64: 1, 8>}, {transform_indices = @transform_5, window_bounds = array<i64: 16, 8>}, {transform_indices = @transform_6, window_bounds = array<i64: 16, 2>}, {transform_indices = @transform_7, window_bounds = array<i64: 16, 2>}]} {
    %c0 = arith.constant 0 : index
    %c0_0 = arith.constant 0 : index
    %0 = vector.load %arg1[%c0, %c0_0] : memref<16x32xbf16, #tpu.memory_space<vmem>>, vector<16x32xbf16>
    %c0_1 = arith.constant 0 : index
    %c0_2 = arith.constant 0 : index
    %1 = vector.load %arg2[%c0_1, %c0_2] : memref<32x16xbf16, #tpu.memory_space<vmem>>, vector<32x16xbf16>
    %cst = arith.constant dense<0.000000e+00> : vector<16x16xf32>
    %2 = tpu.matmul %0, %1, %cst {dimension_numbers = #tpu.dot_dimension_numbers<[1], [0], [0], [1], [0, 0, 1, 1], [], []>} : vector<16x32xbf16>, vector<32x16xbf16>, vector<16x16xf32> -> vector<16x16xf32>
    %c0_3 = arith.constant 0 : index
    %c0_4 = arith.constant 0 : index
    %3 = vector.load %arg3[%c0_3, %c0_4] : memref<1x16xf32, #tpu.memory_space<vmem>>, vector<1x16xf32>
    %4 = vector.broadcast %3 : vector<1x16xf32> to vector<16x16xf32>
    %5 = arith.addf %2, %4 : vector<16x16xf32>
    %cst_5 = arith.constant 0.000000e+00 : f32
    %6 = vector.broadcast %cst_5 : f32 to vector<16x16xf32>
    %7 = arith.maximumf %5, %6 : vector<16x16xf32>
    %8 = arith.truncf %7 : vector<16x16xf32> to vector<16x16xbf16>
    %c0_6 = arith.constant 0 : index
    %c0_7 = arith.constant 0 : index
    %9 = vector.load %arg4[%c0_6, %c0_7] : memref<16x8xbf16, #tpu.memory_space<vmem>>, vector<16x8xbf16>
    %cst_8 = arith.constant dense<0.000000e+00> : vector<16x8xf32>
    %10 = tpu.matmul %8, %9, %cst_8 {dimension_numbers = #tpu.dot_dimension_numbers<[1], [0], [0], [1], [0, 0, 1, 1], [], []>} : vector<16x16xbf16>, vector<16x8xbf16>, vector<16x8xf32> -> vector<16x8xf32>
    %c0_9 = arith.constant 0 : index
    %c0_10 = arith.constant 0 : index
    %11 = vector.load %arg5[%c0_9, %c0_10] : memref<1x8xf32, #tpu.memory_space<vmem>>, vector<1x8xf32>
    %12 = vector.broadcast %11 : vector<1x8xf32> to vector<16x8xf32>
    %13 = arith.addf %10, %12 : vector<16x8xf32>
    %cst_11 = arith.constant dense<0xFF800000> : vector<16xf32>
    %14 = vector.multi_reduction <maximumf>, %13, %cst_11 [1] : vector<16x8xf32> to vector<16xf32>
    %15 = vector.shape_cast %14 : vector<16xf32> to vector<16x1xf32>
    %16 = vector.broadcast %15 : vector<16x1xf32> to vector<16x8xf32>
    %17 = arith.subf %13, %16 : vector<16x8xf32>
    %18 = math.exp %17 : vector<16x8xf32>
    %cst_12 = arith.constant dense<0.000000e+00> : vector<16xf32>
    %19 = vector.multi_reduction <add>, %18, %cst_12 [1] : vector<16x8xf32> to vector<16xf32>
    %20 = vector.shape_cast %19 : vector<16xf32> to vector<16x1xf32>
    %21 = vector.broadcast %20 : vector<16x1xf32> to vector<16x8xf32>
    %22 = arith.divf %18, %21 : vector<16x8xf32>
    %c0_13 = arith.constant 0 : index
    %c0_14 = arith.constant 0 : index
    %23 = vector.load %arg6[%c0_13, %c0_14] : memref<16x8xf32, #tpu.memory_space<vmem>>, vector<16x8xf32>
    tpu.vector_store %arg6[%c0_13, %c0_14], %22 {strides = array<i32>} : memref<16x8xf32, #tpu.memory_space<vmem>>, vector<16x8xf32>,
    %24 = tpu.iota {dimensions = array<i32: 1>} : vector<16x8xi32>
    %cst_15 = arith.constant dense<0xFF800000> : vector<16xf32>
    %25 = vector.multi_reduction <maximumf>, %18, %cst_15 [1] : vector<16x8xf32> to vector<16xf32>
    %26 = vector.shape_cast %25 : vector<16xf32> to vector<16x1xf32>
    %27 = vector.broadcast %26 : vector<16x1xf32> to vector<16x8xf32>
    %28 = arith.cmpf oeq, %18, %27 : vector<16x8xf32>
    %c8_i32 = arith.constant 8 : i32
    %29 = vector.broadcast %c8_i32 : i32 to vector<16x8xi32>
    %30 = arith.select %28, %24, %29 : vector<16x8xi1>, vector<16x8xi32>
    %cst_16 = arith.constant dense<2147483647> : vector<16xi32>
    %31 = vector.multi_reduction <minsi>, %30, %cst_16 [1] : vector<16x8xi32> to vector<16xi32>
    %32 = vector.shape_cast %31 : vector<16xi32> to vector<16x1xi32>
    %33 = vector.broadcast %32 : vector<16x1xi32> to vector<16x8xi32>
    %34 = arith.cmpi eq, %24, %33 : vector<16x8xi32>
    %cst_17 = arith.constant 0xFF800000 : f32
    %35 = vector.broadcast %cst_17 : f32 to vector<16x8xf32>
    %36 = arith.select %34, %35, %18 : vector<16x8xi1>, vector<16x8xf32>
    %cst_18 = arith.constant dense<0xFF800000> : vector<16xf32>
    %37 = vector.multi_reduction <maximumf>, %36, %cst_18 [1] : vector<16x8xf32> to vector<16xf32>
    %38 = vector.shape_cast %37 : vector<16xf32> to vector<16x1xf32>
    %39 = vector.broadcast %38 : vector<16x1xf32> to vector<16x8xf32>
    %40 = arith.cmpf oeq, %36, %39 : vector<16x8xf32>
    %c8_i32_19 = arith.constant 8 : i32
    %41 = vector.broadcast %c8_i32_19 : i32 to vector<16x8xi32>
    %42 = arith.select %40, %24, %41 : vector<16x8xi1>, vector<16x8xi32>
    %cst_20 = arith.constant dense<2147483647> : vector<16xi32>
    %43 = vector.multi_reduction <minsi>, %42, %cst_20 [1] : vector<16x8xi32> to vector<16xi32>
    %44 = vector.shape_cast %43 : vector<16xi32> to vector<16x1xi32>
    %45 = arith.addf %26, %38 : vector<16x1xf32>
    %46 = arith.divf %26, %45 : vector<16x1xf32>
    %47 = arith.divf %38, %45 : vector<16x1xf32>
    %48 = tpu.iota {dimensions = array<i32: 1>} : vector<16x2xi32>
    %c0_i32 = arith.constant 0 : i32
    %49 = vector.broadcast %c0_i32 : i32 to vector<16x2xi32>
    %50 = arith.cmpi eq, %48, %49 : vector<16x2xi32>
    %51 = vector.shape_cast %46 : vector<16x1xf32> to vector<16x1xf32>
    %52 = vector.broadcast %51 : vector<16x1xf32> to vector<16x2xf32>
    %53 = vector.shape_cast %47 : vector<16x1xf32> to vector<16x1xf32>
    %54 = vector.broadcast %53 : vector<16x1xf32> to vector<16x2xf32>
    %55 = arith.select %50, %52, %54 : vector<16x2xi1>, vector<16x2xf32>
    %c0_21 = arith.constant 0 : index
    %c0_22 = arith.constant 0 : index
    %56 = vector.load %arg7[%c0_21, %c0_22] : memref<16x2xf32, #tpu.memory_space<vmem>>, vector<16x2xf32>
    tpu.vector_store %arg7[%c0_21, %c0_22], %55 {strides = array<i32>} : memref<16x2xf32, #tpu.memory_space<vmem>>, vector<16x2xf32>,
    %c0_i32_23 = arith.constant 0 : i32
    %57 = vector.broadcast %c0_i32_23 : i32 to vector<16x2xi32>
    %58 = arith.cmpi eq, %48, %57 : vector<16x2xi32>
    %59 = vector.shape_cast %32 : vector<16x1xi32> to vector<16x1xi32>
    %60 = vector.broadcast %59 : vector<16x1xi32> to vector<16x2xi32>
    %61 = vector.shape_cast %44 : vector<16x1xi32> to vector<16x1xi32>
    %62 = vector.broadcast %61 : vector<16x1xi32> to vector<16x2xi32>
    %63 = arith.select %58, %60, %62 : vector<16x2xi1>, vector<16x2xi32>
    %c0_24 = arith.constant 0 : index
    %c0_25 = arith.constant 0 : index
    %64 = vector.load %arg8[%c0_24, %c0_25] : memref<16x2xi32, #tpu.memory_space<vmem>>, vector<16x2xi32>
    tpu.vector_store %arg8[%c0_24, %c0_25], %63 {strides = array<i32>} : memref<16x2xi32, #tpu.memory_space<vmem>>, vector<16x2xi32>,
    return
  }
  func.func @transform_0(%arg0: i32) -> (i32, i32) {
    %c0_i32 = arith.constant 0 : i32
    %c0_i32_0 = arith.constant 0 : i32
    return %arg0, %c0_i32 : i32, i32
  }
  func.func @transform_1(%arg0: i32) -> (i32, i32) {
    %c0_i32 = arith.constant 0 : i32
    %c0_i32_0 = arith.constant 0 : i32
    %c0_i32_1 = arith.constant 0 : i32
    return %c0_i32, %c0_i32_0 : i32, i32
  }
  func.func @transform_2(%arg0: i32) -> (i32, i32) {
    %c0_i32 = arith.constant 0 : i32
    %c0_i32_0 = arith.constant 0 : i32
    %c0_i32_1 = arith.constant 0 : i32
    return %c0_i32, %c0_i32_0 : i32, i32
  }
  func.func @transform_3(%arg0: i32) -> (i32, i32) {
    %c0_i32 = arith.constant 0 : i32
    %c0_i32_0 = arith.constant 0 : i32
    %c0_i32_1 = arith.constant 0 : i32
    return %c0_i32, %c0_i32_0 : i32, i32
  }
  func.func @transform_4(%arg0: i32) -> (i32, i32) {
    %c0_i32 = arith.constant 0 : i32
    %c0_i32_0 = arith.constant 0 : i32
    %c0_i32_1 = arith.constant 0 : i32
    return %c0_i32, %c0_i32_0 : i32, i32
  }
  func.func @transform_5(%arg0: i32) -> (i32, i32) {
    %c0_i32 = arith.constant 0 : i32
    %c0_i32_0 = arith.constant 0 : i32
    return %arg0, %c0_i32 : i32, i32
  }
  func.func @transform_6(%arg0: i32) -> (i32, i32) {
    %c0_i32 = arith.constant 0 : i32
    %c0_i32_0 = arith.constant 0 : i32
    return %arg0, %c0_i32 : i32, i32
  }
  func.func @transform_7(%arg0: i32) -> (i32, i32) {
    %c0_i32 = arith.constant 0 : i32
    %c0_i32_0 = arith.constant 0 : i32
    return %arg0, %c0_i32 : i32, i32
  }
}

</mosaic_0001>

<llo_original>
// kernel: tpu_custom_call.1
$region0: #{tpu_custom_call.1}
  #allocation0 [shape = 'u32[]', space=smem, size = 0x4, offset = 0x4, fixed_abs, tag = 'smem constant byte address 0x4 - core index']
  #allocation1 [shape = 'u32[144,128]{1,0:T(1,128)}', space=vmem, size = 0x12000, scoped, tag = 'internal scratch']
  %s0 = inlined_call_operand.vmem [shape: bf16[16,32], index: 0, kind: input, shape index: {}]
  %s1 = inlined_call_operand.vmem [shape: bf16[32,16], index: 1, kind: input, shape index: {}]
  %s2 = inlined_call_operand.vmem [shape: f32[1,16], index: 2, kind: input, shape index: {}]
  %s3 = inlined_call_operand.vmem [shape: bf16[16,8], index: 3, kind: input, shape index: {}]
  %s4 = inlined_call_operand.vmem [shape: f32[1,8], index: 4, kind: input, shape index: {}]
  %s5 = inlined_call_operand.vmem [shape: f32[16,8], index: 5, kind: output, shape index: {0}]
  %s6 = inlined_call_operand.vmem [shape: f32[16,2], index: 6, kind: output, shape index: {1}]
  %s7 = inlined_call_operand.vmem [shape: s32[16,2], index: 7, kind: output, shape index: {2}]
  %8 = xla_tuple %s5, %s6, %s7
  %s9 = sld [smem:[#allocation0]]
  $region46: #{tpu_custom_call.1} parent=0
    _
  %s11 = ssub.s32 1, %s9
  %s12 = scalar_select 0, %s11, %s9
  // Predicated region
  $region2: #{tpu_custom_call.1} parent=0 // pred_check
    _
  $region3: #{tpu_custom_call.1} parent=0 // pred_check_branch
    %14 = sbr.rel (0) target = $region5
  $region4: #{tpu_custom_call.1} parent=0 // pred_region
    _
  $region5: #{tpu_custom_call.1} parent=0 // pred_fallthru
    _
  // Predicated region
  $region6: #{tpu_custom_call.1} parent=0 // pred_check
    _
  $region7: #{tpu_custom_call.1} parent=0 // pred_check_branch
    %16 = sbr.rel (0) target = $region9
  $region8: #{tpu_custom_call.1} parent=0 // pred_region
    _
  $region9: #{tpu_custom_call.1} parent=0 // pred_fallthru
    _
  // Predicated region
  $region10: #{tpu_custom_call.1} parent=0 // pred_check
    _
  $region11: #{tpu_custom_call.1} parent=0 // pred_check_branch
    %18 = sbr.rel (0) target = $region13
  $region12: #{tpu_custom_call.1} parent=0 // pred_region
    _
  $region13: #{tpu_custom_call.1} parent=0 // pred_fallthru
    _
  // Predicated region
  $region14: #{tpu_custom_call.1} parent=0 // pred_check
    _
  $region15: #{tpu_custom_call.1} parent=0 // pred_check_branch
    %20 = sbr.rel (0) target = $region17
  $region16: #{tpu_custom_call.1} parent=0 // pred_region
    _
  $region17: #{tpu_custom_call.1} parent=0 // pred_fallthru
    _
  // Predicated region
  $region18: #{tpu_custom_call.1} parent=0 // pred_check
    _
  $region19: #{tpu_custom_call.1} parent=0 // pred_check_branch
    %22 = sbr.rel (0) target = $region21
  $region20: #{tpu_custom_call.1} parent=0 // pred_region
    _
  $region21: #{tpu_custom_call.1} parent=0 // pred_fallthru
    _
  %v24 = vld [vmem:[%s0] sm:$0xf]
  %v25 = vld [vmem:[%s0 + $0x4] sm:$0xf]
  %v26 = vld [vmem:[%s1] sm:$0xf]
  %v27 = vld [vmem:[%s1 + $0x4] sm:$0xf]
  %v28 = vld [vmem:[%s1 + $0x8] sm:$0xf]
  %v29 = vld [vmem:[%s1 + $0xc] sm:$0xf]
  %v30 = vld [vmem:[%s2] sm:$0x1]
  %v32 = vlaneseq
  %v33 = vshrl.u32 %v32, 7
  %v34 = vsub.s32 0, %v33
  %v35 = vrot.slane %v30, %v34
  %v39 = vunpack.c.l.b16 %v24
  %v40 = vunpack.c.l.b16 %v25
  %v41 = vpack.c.b16 %v40, %v39
  %v46 = vunpack.c.l.b16 %v26
  %v47 = vunpack.c.l.b16 %v27
  %v48 = vunpack.c.l.b16 %v28
  %v49 = vunpack.c.l.b16 %v29
  %v50 = vpack.c.b16 %v47, %v46
  %v51 = vpack.c.b16 %v49, %v48
  %vm54 = vcmask 261120
  %v56 = vsel %vm54, %v41, 0
  %58 = vmatprep.subr.bf16.mxu0 0
  %59 = vmatpush1.bf16.msra.mxu0 %v50
  %60 = vmatprep.subr.bf16.mxu0 0
  %61 = vmatpush1.bf16.msra.mxu0 %v51
  %62 = vmatprep.subr.bf16.mxu0 0
  %63 = vmatpush1.bf16.msra.mxu0 0
  %64 = vmatprep.subr.bf16.mxu0 0
  %65 = vmatpush1.bf16.msra.mxu0 0
  %66 = vmatprep.subr.bf16.mxu0 0
  %67 = vmatpush1.bf16.msra.mxu0 0
  %68 = vmatprep.subr.bf16.mxu0 0
  %69 = vmatpush1.bf16.msra.mxu0 0
  %70 = vmatprep.subr.bf16.mxu0 0
  %71 = vmatpush1.bf16.msra.mxu0 0
  %72 = vmatprep.subr.bf16.mxu0 0
  %73 = vmatpush1.bf16.msra.mxu0 0
  %74 = vmatprep.subr.bf16.mxu0 0
  %75 = vmatpush1.bf16.msra.mxu0 0
  %76 = vmatprep.subr.bf16.mxu0 0
  %77 = vmatpush1.bf16.msra.mxu0 0
  %78 = vmatprep.subr.bf16.mxu0 0
  %79 = vmatpush1.bf16.msra.mxu0 0
  %80 = vmatprep.subr.bf16.mxu0 0
  %81 = vmatpush1.bf16.msra.mxu0 0
  %82 = vmatprep.subr.bf16.mxu0 0
  %83 = vmatpush1.bf16.msra.mxu0 0
  %84 = vmatprep.subr.bf16.mxu0 0
  %85 = vmatpush1.bf16.msra.mxu0 0
  %86 = vmatprep.subr.bf16.mxu0 0
  %87 = vmatpush1.bf16.msra.mxu0 0
  %88 = vmatprep.subr.bf16.mxu0 0
  %89 = vmatpush1.bf16.msra.mxu0 0
  %90 = vmatprep.mubr.bf16.mxu0 0
  %91 = vmatmul.mubr.bf16.gmra.mrb[0].mxu0 %v56
  %v92 = vpop.f32.mrb[0].mxu0
  %v93 = vadd.f32 %v35, %v92
  %v94 = vpop.f32.mrb[0].mxu0
  %v95 = vpop.f32.mrb[0].mxu0
  %v96 = vadd.f32 %v35, %v95
  %v97 = vpop.f32.mrb[0].mxu0
  %98 = vdwg.mxu0
  %v99 = vmax.f32 %v93, 0.0
  %v100 = vmax.f32 %v96, 0.0
  %v101 = vpack.c.bf16 %v100, %v99
  %v102 = vld [vmem:[%s3] sm:$0xf]
  %v103 = vld [vmem:[%s3 + $0x4] sm:$0xf]
  %v104 = vld [vmem:[%s4] sm:$0x1]
  %v106 = vlaneseq
  %v107 = vshrl.u32 %v106, 7
  %v108 = vsub.s32 0, %v107
  %v109 = vrot.slane %v104, %v108
  %v113 = vunpack.c.l.b16 %v102
  %v114 = vunpack.c.l.b16 %v103
  %v115 = vpack.c.b16 %v114, %v113
  %vm117 = vcmask 130048
  %v119 = vsel %vm117, %v101, 0
  %121 = vmatprep.subr.bf16.mxu0 0
  %122 = vmatpush1.bf16.msra.mxu0 %v115
  %123 = vmatprep.subr.bf16.mxu0 0
  %124 = vmatpush1.bf16.msra.mxu0 0
  %125 = vmatprep.subr.bf16.mxu0 0
  %126 = vmatpush1.bf16.msra.mxu0 0
  %127 = vmatprep.subr.bf16.mxu0 0
  %128 = vmatpush1.bf16.msra.mxu0 0
  %129 = vmatprep.subr.bf16.mxu0 0
  %130 = vmatpush1.bf16.msra.mxu0 0
  %131 = vmatprep.subr.bf16.mxu0 0
  %132 = vmatpush1.bf16.msra.mxu0 0
  %133 = vmatprep.subr.bf16.mxu0 0
  %134 = vmatpush1.bf16.msra.mxu0 0
  %135 = vmatprep.subr.bf16.mxu0 0
  %136 = vmatpush1.bf16.msra.mxu0 0
  %137 = vmatprep.subr.bf16.mxu0 0
  %138 = vmatpush1.bf16.msra.mxu0 0
  %139 = vmatprep.subr.bf16.mxu0 0
  %140 = vmatpush1.bf16.msra.mxu0 0
  %141 = vmatprep.subr.bf16.mxu0 0
  %142 = vmatpush1.bf16.msra.mxu0 0
  %143 = vmatprep.subr.bf16.mxu0 0
  %144 = vmatpush1.bf16.msra.mxu0 0
  %145 = vmatprep.subr.bf16.mxu0 0
  %146 = vmatpush1.bf16.msra.mxu0 0
  %147 = vmatprep.subr.bf16.mxu0 0
  %148 = vmatpush1.bf16.msra.mxu0 0
  %149 = vmatprep.subr.bf16.mxu0 0
  %150 = vmatpush1.bf16.msra.mxu0 0
  %151 = vmatprep.subr.bf16.mxu0 0
  %152 = vmatpush1.bf16.msra.mxu0 0
  %153 = vmatprep.mubr.bf16.mxu0 0
  %154 = vmatmul.mubr.bf16.gmra.mrb[0].mxu0 %v119
  %v155 = vpop.f32.mrb[0].mxu0
  %v156 = vadd.f32 %v109, %v155
  %v157 = vpop.f32.mrb[0].mxu0
  %v158 = vpop.f32.mrb[0].mxu0
  %v159 = vadd.f32 %v109, %v158
  %v160 = vpop.f32.mrb[0].mxu0
  %161 = vdwg.mxu0
  %vm162 = vcmask 64512
  %v163 = vsel %vm162, %v156, -inf
  %164 = vmax.xlane.f32.xlu0 %v163
  %v165 = vpop.xlane.xlu0 %164
  %v166 = vsel %vm162, %v159, -inf
  %167 = vmax.xlane.f32.xlu0 %v166
  %v168 = vpop.xlane.xlu0 %167
  %v169 = vsub.f32 %v156, %v165
  %v170 = vsub.f32 %v159, %v168
  %v171 = vmul.f32 %v169, 1.442695
  %v172 = vpow.pop %v171
  %v173 = vmul.f32 %v170, 1.442695
  %v174 = vpow.pop %v173
  %v175 = vsel %vm162, %v172, 0.0
  %176 = vadd.xlane.f32.xlu0 %v175
  %v177 = vpop.xlane.xlu0 %176
  %v178 = vsel %vm162, %v174, 0.0
  %179 = vadd.xlane.f32.xlu0 %v178
  %v180 = vpop.xlane.xlu0 %179
  %v181 = vrcp.pop %v177
  %v182 = vmul.f32 %v172, %v181
  %v183 = vrcp.pop %v180
  %v184 = vmul.f32 %v174, %v183
  %185 = vst.msk [vmem:[%s5] sm:$0xff] %vm162, %v182
  %186 = vst.msk [vmem:[%s5 + $0x8] sm:$0xff] %vm162, %v184
  %v187 = vlaneseq
  %v188 = vand.u32 %v187, 127
  %v189 = vsel %vm162, %v172, -inf
  %190 = vmax.xlane.f32.xlu0 %v189
  %v191 = vpop.xlane.xlu0 %190
  %v192 = vsel %vm162, %v174, -inf
  %193 = vmax.xlane.f32.xlu0 %v192
  %v194 = vpop.xlane.xlu0 %193
  %vm195 = vcmp.eq.f32.partialorder %v172, %v191
  %vm196 = vcmp.eq.f32.partialorder %v174, %v194
  %v197 = vsel %vm195, %v188, 8
  %v198 = vsel %vm196, %v188, 8
  %v199 = vsel %vm162, %v197, 2147483647
  %v200 = vand.u32 %v199, 65535
  %v201 = vshra.s32 %v199, 16
  %v202 = vcvt.s32.f32 %v200
  %v203 = vcvt.s32.f32 %v201
  %204 = vmin.xlane.f32.xlu0 %v203
  %v205 = vpop.xlane.xlu0 %204
  %vm206 = vcmp.eq.f32.partialorder %v203, %v205
  %v207 = vsel %vm206, %v202, inf
  %208 = vmin.xlane.f32.xlu0 %v207
  %v209 = vpop.xlane.xlu0 %208
  %v210 = vcvt.f32.s32 %v209
  %v211 = vcvt.f32.s32 %v205
  %v212 = vshll.u32 %v211, 16
  %v213 = vadd.s32 %v212, %v210
  %v214 = vsel %vm162, %v198, 2147483647
  %v215 = vand.u32 %v214, 65535
  %v216 = vshra.s32 %v214, 16
  %v217 = vcvt.s32.f32 %v215
  %v218 = vcvt.s32.f32 %v216
  %219 = vmin.xlane.f32.xlu0 %v218
  %v220 = vpop.xlane.xlu0 %219
  %vm221 = vcmp.eq.f32.partialorder %v218, %v220
  %v222 = vsel %vm221, %v217, inf
  %223 = vmin.xlane.f32.xlu0 %v222
  %v224 = vpop.xlane.xlu0 %223
  %v225 = vcvt.f32.s32 %v224
  %v226 = vcvt.f32.s32 %v220
  %v227 = vshll.u32 %v226, 16
  %v228 = vadd.s32 %v227, %v225
  %vm229 = vcmp.eq.s32.totalorder %v188, %v213
  %vm230 = vcmp.eq.s32.totalorder %v188, %v228
  %v231 = vsel %vm229, -inf, %v172
  %v232 = vsel %vm230, -inf, %v174
  %v233 = vsel %vm162, %v231, -inf
  %234 = vmax.xlane.f32.xlu0 %v233
  %v235 = vpop.xlane.xlu0 %234
  %v236 = vsel %vm162, %v232, -inf
  %237 = vmax.xlane.f32.xlu0 %v236
  %v238 = vpop.xlane.xlu0 %237
  %vm239 = vcmp.eq.f32.partialorder %v231, %v235
  %vm240 = vcmp.eq.f32.partialorder %v232, %v238
  %v241 = vsel %vm239, %v188, 8
  %v242 = vsel %vm240, %v188, 8
  %v243 = vsel %vm162, %v241, 2147483647
  %v244 = vand.u32 %v243, 65535
  %v245 = vshra.s32 %v243, 16
  %v246 = vcvt.s32.f32 %v244
  %v247 = vcvt.s32.f32 %v245
  %248 = vmin.xlane.f32.xlu0 %v247
  %v249 = vpop.xlane.xlu0 %248
  %vm250 = vcmp.eq.f32.partialorder %v247, %v249
  %v251 = vsel %vm250, %v246, inf
  %252 = vmin.xlane.f32.xlu0 %v251
  %v253 = vpop.xlane.xlu0 %252
  %v254 = vcvt.f32.s32 %v253
  %v255 = vcvt.f32.s32 %v249
  %v256 = vshll.u32 %v255, 16
  %v257 = vadd.s32 %v256, %v254
  %v258 = vsel %vm162, %v242, 2147483647
  %v259 = vand.u32 %v258, 65535
  %v260 = vshra.s32 %v258, 16
  %v261 = vcvt.s32.f32 %v259
  %v262 = vcvt.s32.f32 %v260
  %263 = vmin.xlane.f32.xlu0 %v262
  %v264 = vpop.xlane.xlu0 %263
  %vm265 = vcmp.eq.f32.partialorder %v262, %v264
  %v266 = vsel %vm265, %v261, inf
  %267 = vmin.xlane.f32.xlu0 %v266
  %v268 = vpop.xlane.xlu0 %267
  %v269 = vcvt.f32.s32 %v268
  %v270 = vcvt.f32.s32 %v264
  %v271 = vshll.u32 %v270, 16
  %v272 = vadd.s32 %v271, %v269
  %v273 = vadd.f32 %v191, %v235
  %v274 = vadd.f32 %v194, %v238
  %v275 = vrcp.pop %v273
  %v276 = vmul.f32 %v191, %v275
  %v277 = vrcp.pop %v274
  %v278 = vmul.f32 %v194, %v277
  %v279 = vmul.f32 %v235, %v275
  %v280 = vmul.f32 %v238, %v277
  %vm281 = vcmp.eq.s32.totalorder %v188, 0
  %v282 = vsel %vm281, %v276, %v279
  %v283 = vsel %vm281, %v278, %v280
  %vm284 = vcmask 15360
  %285 = vst.msk [vmem:[%s6] sm:$0xff] %vm284, %v282
  %286 = vst.msk [vmem:[%s6 + $0x8] sm:$0xff] %vm284, %v283
  %v287 = vsel %vm281, %v213, %v257
  %v288 = vsel %vm281, %v228, %v272
  %289 = vst.msk [vmem:[%s7] sm:$0xff] %vm284, %v287
  %290 = vst.msk [vmem:[%s7 + $0x8] sm:$0xff] %vm284, %v288
  // Predicated region
  $region22: #{tpu_custom_call.1} parent=0 // pred_check
    _
  $region23: #{tpu_custom_call.1} parent=0 // pred_check_branch
    %292 = sbr.rel (0) target = $region25
  $region24: #{tpu_custom_call.1} parent=0 // pred_region
    _
  $region25: #{tpu_custom_call.1} parent=0 // pred_fallthru
    _
  // Predicated region
  $region26: #{tpu_custom_call.1} parent=0 // pred_check
    _
  $region27: #{tpu_custom_call.1} parent=0 // pred_check_branch
    %294 = sbr.rel (0) target = $region29
  $region28: #{tpu_custom_call.1} parent=0 // pred_region
    _
  $region29: #{tpu_custom_call.1} parent=0 // pred_fallthru
    _
  // Predicated region
  $region30: #{tpu_custom_call.1} parent=0 // pred_check
    _
  $region31: #{tpu_custom_call.1} parent=0 // pred_check_branch
    %296 = sbr.rel (0) target = $region33
  $region32: #{tpu_custom_call.1} parent=0 // pred_region
    _
  $region33: #{tpu_custom_call.1} parent=0 // pred_fallthru
    _
  // Predicated region
  $region34: #{tpu_custom_call.1} parent=0 // pred_check
    _
  $region35: #{tpu_custom_call.1} parent=0 // pred_check_branch
    %298 = sbr.rel (0) target = $region37
  $region36: #{tpu_custom_call.1} parent=0 // pred_region
    _
  $region37: #{tpu_custom_call.1} parent=0 // pred_fallthru
    _
  // Predicated region
  $region38: #{tpu_custom_call.1} parent=0 // pred_check
    _
  $region39: #{tpu_custom_call.1} parent=0 // pred_check_branch
    %300 = sbr.rel (0) target = $region41
  $region40: #{tpu_custom_call.1} parent=0 // pred_region
    _
  $region41: #{tpu_custom_call.1} parent=0 // pred_fallthru
    _
  // Predicated region
  $region42: #{tpu_custom_call.1} parent=0 // pred_check
    _
  $region43: #{tpu_custom_call.1} parent=0 // pred_check_branch
    %302 = sbr.rel (0) target = $region45
  $region44: #{tpu_custom_call.1} parent=0 // pred_region
    _
  $region45: #{tpu_custom_call.1} parent=0 // pred_fallthru
    _

</llo_original>
